<compile_context>
chip_gen: v7x
topology: tpu7x:2x2x1
jax: 0.10.0
libtpu: 0.0.40
codegen_flags: <defaults>
</compile_context>

<pallas_src>
import functools

import jax
import jax.numpy as jnp
from jax.experimental import pallas as pl
from jax.experimental.pallas import tpu as pltpu


def _round_up(x, m):
    return ((x + m - 1) // m) * m


def mlp_kernel(w_ref, x_ref, o_ref):
    # x_ref: (8, TB)  rows 0..5 = features, row 6 = 0, row 7 = 1 (bias row)
    # w_ref: (4, 8, 8) packed [W_i | bias in col 7], identity at [7,7]
    h = x_ref[...]                                               # (8, TB) f32

    # Layers 1-3: h <- relu(W_aug @ h)   (bias folded via ones row)
    for i in range(3):
        h = jnp.maximum(
            jnp.dot(w_ref[i], h, preferred_element_type=jnp.float32), 0.0)

    # Layer 4 (no ReLU): only rows 0 and 1 of the result are real logits.
    logits = jnp.dot(w_ref[3], h, preferred_element_type=jnp.float32)  # (8, TB)
    l0 = logits[0:1, :]
    l1 = logits[1:2, :]

    # Numerically stable 2-class softmax, no cross-lane reductions.
    m = jnp.maximum(l0, l1)
    e0 = jnp.exp(l0 - m)
    e1 = jnp.exp(l1 - m)
    s = e0 + e1
    r = pl.reciprocal(s, approx=True)
    r = r * (2.0 - s * r)          # one Newton-Raphson step -> ~f32 accuracy

    o_ref[0:1, :] = (e0 * r).astype(o_ref.dtype)
    o_ref[1:2, :] = (e1 * r).astype(o_ref.dtype)


def pack_params(params):
    """Pack PyTorch-layout params [(W(out,in), b(out,)), ...] into a (4,8,8) slab."""
    slab = jnp.zeros((4, 8, 8), jnp.float32)
    for i, (w, b) in enumerate(params):
        out_f, in_f = w.shape
        slab = slab.at[i, :out_f, :in_f].set(w.astype(jnp.float32))
        slab = slab.at[i, :out_f, 7].set(b.astype(jnp.float32))   # bias column
        slab = slab.at[i, 7, 7].set(1.0)                          # keep ones-row alive
    return slab


@functools.partial(jax.jit, static_argnames=())
def mlp_forward(x, params):
    B, F = x.shape
    assert F == 6, "Model expects 6 input features"

    # Batch tile on the lane axis: >=128 lanes, up to 512 per grid step.
    TB = min(512, _round_up(max(B, 1), 128))
    B_pad = _round_up(B, TB)

    slab = pack_params(params)                                    # (4, 8, 8)

    # Lane-major input: (features, batch) with zero pad row 6 and ones row 7.
    x_pad = jnp.zeros((8, B_pad), jnp.float32)
    x_pad = x_pad.at[:6, :B].set(x.T.astype(jnp.float32))
    x_pad = x_pad.at[7, :].set(1.0)

    grid = (B_pad // TB,)
    out_pad = pl.pallas_call(
        mlp_kernel,
        out_shape=jax.ShapeDtypeStruct((2, B_pad), jnp.float32),
        grid=grid,
        in_specs=[
            pl.BlockSpec((4, 8, 8), lambda i: (0, 0, 0)),   # weights: resident
            pl.BlockSpec((8, TB), lambda i: (0, i)),        # activations: tiled on batch
        ],
        out_specs=pl.BlockSpec((2, TB), lambda i: (0, i)),
        compiler_params=pltpu.CompilerParams(
            dimension_semantics=("parallel",)),
    )(slab, x_pad)

    return out_pad[:, :B].T                                      # (B, 2)


def init_params(key):
    """Deterministic init mimicking nn.Linear defaults, PyTorch (out, in) layout."""
    dims = [(6, 5), (5, 4), (4, 3), (3, 2)]
    params = []
    for fan_in, fan_out in dims:
        key, kw, kb = jax.random.split(key, 3)
        bound = float(fan_in) ** -0.5
        w = jax.random.uniform(kw, (fan_out, fan_in), jnp.float32, -bound, bound)
        b = jax.random.uniform(kb, (fan_out,), jnp.float32, -bound, bound)
        params.append((w, b))
    return params


def reference_forward(x, params):
    """Pure-JAX reference matching the PyTorch module."""
    h = x
    for i, (w, b) in enumerate(params):
        h = h @ w.T + b
        if i < 3:
            h = jnp.maximum(h, 0.0)
    h = h - jnp.max(h, axis=1, keepdims=True)
    e = jnp.exp(h)
    return e / jnp.sum(e, axis=1, keepdims=True)


if __name__ == "__main__":
    key = jax.random.PRNGKey(0)
    key, kx = jax.random.split(key)

    B = 8
    x = jax.random.normal(kx, (B, 6), jnp.float32)
    params = init_params(key)

    out = mlp_forward(x, params)
    out = jax.block_until_ready(out)

    ref = reference_forward(x, params)
    assert out.shape == (B, 2)
    assert jnp.allclose(out, ref, atol=1e-4, rtol=1e-4), "mismatch vs reference"
    # rows of a softmax sum to 1
    assert jnp.allclose(jnp.sum(out, axis=1), jnp.ones((B,)), atol=1e-5)

    print("KERNEL_OK")
</pallas_src>

<mosaic_0001>
module attributes {stable_mosaic.version = 11 : i64} {
  func.func @mlp_kernel(%arg0: i32, %arg1: memref<4x8x8xf32, #tpu.memory_space<vmem>>, %arg2: memref<8x128xf32, #tpu.memory_space<vmem>>, %arg3: memref<2x128xf32, #tpu.memory_space<vmem>>) attributes {dimension_semantics = [#tpu.dimension_semantics<parallel>], iteration_bounds = array<i64: 1>, scalar_prefetch = 0 : i64, scratch_operands = 0 : i64, tpu.core_type = #tpu.core_type<tc>, window_params = [{pipeline_mode = #tpu.pipeline_mode<synchronous>, transform_indices = @transform_0, window_bounds = array<i64: 4, 8, 8>}, {transform_indices = @transform_1, window_bounds = array<i64: 8, 128>}, {transform_indices = @transform_2, window_bounds = array<i64: 2, 128>}]} {
    %c0 = arith.constant 0 : index
    %c0_0 = arith.constant 0 : index
    %0 = vector.load %arg2[%c0, %c0_0] : memref<8x128xf32, #tpu.memory_space<vmem>>, vector<8x128xf32>
    %c0_1 = arith.constant 0 : index
    %c0_2 = arith.constant 0 : index
    %c0_3 = arith.constant 0 : index
    %1 = vector.load %arg1[%c0_1, %c0_2, %c0_3] : memref<4x8x8xf32, #tpu.memory_space<vmem>>, vector<1x8x8xf32>
    %2 = vector.shape_cast %1 : vector<1x8x8xf32> to vector<8x8xf32>
    %cst = arith.constant dense<0.000000e+00> : vector<8x128xf32>
    %3 = tpu.matmul %2, %0, %cst {dimension_numbers = #tpu.dot_dimension_numbers<[1], [0], [0], [1], [0, 0, 1, 1], [], []>} : vector<8x8xf32>, vector<8x128xf32>, vector<8x128xf32> -> vector<8x128xf32>
    %cst_4 = arith.constant 0.000000e+00 : f32
    %4 = vector.broadcast %cst_4 : f32 to vector<8x128xf32>
    %5 = arith.maximumf %3, %4 : vector<8x128xf32>
    %c1 = arith.constant 1 : index
    %c0_5 = arith.constant 0 : index
    %c0_6 = arith.constant 0 : index
    %6 = vector.load %arg1[%c1, %c0_5, %c0_6] : memref<4x8x8xf32, #tpu.memory_space<vmem>>, vector<1x8x8xf32>
    %7 = vector.shape_cast %6 : vector<1x8x8xf32> to vector<8x8xf32>
    %cst_7 = arith.constant dense<0.000000e+00> : vector<8x128xf32>
    %8 = tpu.matmul %7, %5, %cst_7 {dimension_numbers = #tpu.dot_dimension_numbers<[1], [0], [0], [1], [0, 0, 1, 1], [], []>} : vector<8x8xf32>, vector<8x128xf32>, vector<8x128xf32> -> vector<8x128xf32>
    %cst_8 = arith.constant 0.000000e+00 : f32
    %9 = vector.broadcast %cst_8 : f32 to vector<8x128xf32>
    %10 = arith.maximumf %8, %9 : vector<8x128xf32>
    %c2 = arith.constant 2 : index
    %c0_9 = arith.constant 0 : index
    %c0_10 = arith.constant 0 : index
    %11 = vector.load %arg1[%c2, %c0_9, %c0_10] : memref<4x8x8xf32, #tpu.memory_space<vmem>>, vector<1x8x8xf32>
    %12 = vector.shape_cast %11 : vector<1x8x8xf32> to vector<8x8xf32>
    %cst_11 = arith.constant dense<0.000000e+00> : vector<8x128xf32>
    %13 = tpu.matmul %12, %10, %cst_11 {dimension_numbers = #tpu.dot_dimension_numbers<[1], [0], [0], [1], [0, 0, 1, 1], [], []>} : vector<8x8xf32>, vector<8x128xf32>, vector<8x128xf32> -> vector<8x128xf32>
    %cst_12 = arith.constant 0.000000e+00 : f32
    %14 = vector.broadcast %cst_12 : f32 to vector<8x128xf32>
    %15 = arith.maximumf %13, %14 : vector<8x128xf32>
    %c3 = arith.constant 3 : index
    %c0_13 = arith.constant 0 : index
    %c0_14 = arith.constant 0 : index
    %16 = vector.load %arg1[%c3, %c0_13, %c0_14] : memref<4x8x8xf32, #tpu.memory_space<vmem>>, vector<1x8x8xf32>
    %17 = vector.shape_cast %16 : vector<1x8x8xf32> to vector<8x8xf32>
    %cst_15 = arith.constant dense<0.000000e+00> : vector<8x128xf32>
    %18 = tpu.matmul %17, %15, %cst_15 {dimension_numbers = #tpu.dot_dimension_numbers<[1], [0], [0], [1], [0, 0, 1, 1], [], []>} : vector<8x8xf32>, vector<8x128xf32>, vector<8x128xf32> -> vector<8x128xf32>
    %19 = vector.extract_strided_slice %18 {offsets = [0, 0], sizes = [1, 128], strides = [1, 1]} : vector<8x128xf32> to vector<1x128xf32>
    %20 = vector.extract_strided_slice %18 {offsets = [1, 0], sizes = [1, 128], strides = [1, 1]} : vector<8x128xf32> to vector<1x128xf32>
    %21 = arith.maximumf %19, %20 : vector<1x128xf32>
    %22 = arith.subf %19, %21 : vector<1x128xf32>
    %23 = math.exp %22 : vector<1x128xf32>
    %24 = arith.subf %20, %21 : vector<1x128xf32>
    %25 = math.exp %24 : vector<1x128xf32>
    %26 = arith.addf %23, %25 : vector<1x128xf32>
    %27 = tpu.reciprocal %26 {approx = true} : vector<1x128xf32> -> vector<1x128xf32>
    %28 = arith.mulf %26, %27 : vector<1x128xf32>
    %cst_16 = arith.constant 2.000000e+00 : f32
    %29 = vector.broadcast %cst_16 : f32 to vector<1x128xf32>
    %30 = arith.subf %29, %28 : vector<1x128xf32>
    %31 = arith.mulf %27, %30 : vector<1x128xf32>
    %32 = arith.mulf %23, %31 : vector<1x128xf32>
    %c0_17 = arith.constant 0 : index
    %c0_18 = arith.constant 0 : index
    %33 = vector.load %arg3[%c0_17, %c0_18] : memref<2x128xf32, #tpu.memory_space<vmem>>, vector<1x128xf32>
    tpu.vector_store %arg3[%c0_17, %c0_18], %32 {strides = array<i32>} : memref<2x128xf32, #tpu.memory_space<vmem>>, vector<1x128xf32>,
    %34 = arith.mulf %25, %31 : vector<1x128xf32>
    %c1_19 = arith.constant 1 : index
    %c0_20 = arith.constant 0 : index
    %35 = vector.load %arg3[%c1_19, %c0_20] : memref<2x128xf32, #tpu.memory_space<vmem>>, vector<1x128xf32>
    tpu.vector_store %arg3[%c1_19, %c0_20], %34 {strides = array<i32>} : memref<2x128xf32, #tpu.memory_space<vmem>>, vector<1x128xf32>,
    return
  }
  func.func @transform_0(%arg0: i32) -> (i32, i32, i32) {
    %c0_i32 = arith.constant 0 : i32
    %c0_i32_0 = arith.constant 0 : i32
    %c0_i32_1 = arith.constant 0 : i32
    %c0_i32_2 = arith.constant 0 : i32
    return %c0_i32, %c0_i32_0, %c0_i32_1 : i32, i32, i32
  }
  func.func @transform_1(%arg0: i32) -> (i32, i32) {
    %c0_i32 = arith.constant 0 : i32
    %c0_i32_0 = arith.constant 0 : i32
    return %c0_i32, %arg0 : i32, i32
  }
  func.func @transform_2(%arg0: i32) -> (i32, i32) {
    %c0_i32 = arith.constant 0 : i32
    %c0_i32_0 = arith.constant 0 : i32
    return %c0_i32, %arg0 : i32, i32
  }
}

</mosaic_0001>

<llo_original>
// kernel: mlp_forward.1
$region0: #{mlp_forward.1}
  #allocation0 [shape = 'u32[]', space=smem, size = 0x4, offset = 0x4, fixed_abs, tag = 'smem constant byte address 0x4 - core index']
  #allocation1 [shape = 'u32[144,128]{1,0:T(1,128)}', space=vmem, size = 0x12000, scoped, tag = 'internal scratch']
  %s0 = inlined_call_operand.vmem [shape: f32[4,8,8], index: 0, kind: input, shape index: {}]
  %s1 = inlined_call_operand.vmem [shape: f32[8,128], index: 1, kind: input, shape index: {}]
  %s2 = inlined_call_operand.vmem [shape: f32[2,128], index: 2, kind: output, shape index: {}]
  %s3 = sld [smem:[#allocation0]]
  $region18: #{mlp_forward.1} parent=0
    _
  %s5 = ssub.s32 1, %s3
  %s6 = scalar_select 0, %s5, %s3
  // Predicated region
  $region2: #{mlp_forward.1} parent=0 // pred_check
    _
  $region3: #{mlp_forward.1} parent=0 // pred_check_branch
    %8 = sbr.rel (0) target = $region5
  $region4: #{mlp_forward.1} parent=0 // pred_region
    _
  $region5: #{mlp_forward.1} parent=0 // pred_fallthru
    _
  // Predicated region
  $region6: #{mlp_forward.1} parent=0 // pred_check
    _
  $region7: #{mlp_forward.1} parent=0 // pred_check_branch
    %10 = sbr.rel (0) target = $region9
  $region8: #{mlp_forward.1} parent=0 // pred_region
    _
  $region9: #{mlp_forward.1} parent=0 // pred_fallthru
    _
  %v11 = vld [vmem:[%s1] sm:$0xff]
  %v12 = vld [vmem:[%s0] sm:$0xff]
  %vm13 = vcmask 64512
  %v15 = vsel %vm13, %v12, 0
  %17 = vmatprep.subr.mxu0 0.0
  %18 = vmatpush1.msra.mxu0 %v11
  %19 = vmatprep.subr.mxu0 0.0
  %20 = vmatpush1.msra.mxu0 0.0
  %21 = vmatprep.subr.mxu0 0.0
  %22 = vmatpush1.msra.mxu0 0.0
  %23 = vmatprep.subr.mxu0 0.0
  %24 = vmatpush1.msra.mxu0 0.0
  %25 = vmatprep.subr.mxu0 0.0
  %26 = vmatpush1.msra.mxu0 0.0
  %27 = vmatprep.subr.mxu0 0.0
  %28 = vmatpush1.msra.mxu0 0.0
  %29 = vmatprep.subr.mxu0 0.0
  %30 = vmatpush1.msra.mxu0 0.0
  %31 = vmatprep.subr.mxu0 0.0
  %32 = vmatpush1.msra.mxu0 0.0
  %33 = vmatprep.subr.mxu0 0.0
  %34 = vmatpush1.msra.mxu0 0.0
  %35 = vmatprep.subr.mxu0 0.0
  %36 = vmatpush1.msra.mxu0 0.0
  %37 = vmatprep.subr.mxu0 0.0
  %38 = vmatpush1.msra.mxu0 0.0
  %39 = vmatprep.subr.mxu0 0.0
  %40 = vmatpush1.msra.mxu0 0.0
  %41 = vmatprep.subr.mxu0 0.0
  %42 = vmatpush1.msra.mxu0 0.0
  %43 = vmatprep.subr.mxu0 0.0
  %44 = vmatpush1.msra.mxu0 0.0
  %45 = vmatprep.subr.mxu0 0.0
  %46 = vmatpush1.msra.mxu0 0.0
  %47 = vmatprep.subr.mxu0 0.0
  %48 = vmatpush1.msra.mxu0 0.0
  %49 = vmatprep.subr.mxu0 0.0
  %50 = vmatpush1.msra.mxu0 0.0
  %51 = vmatprep.subr.mxu0 0.0
  %52 = vmatpush1.msra.mxu0 0.0
  %53 = vmatprep.subr.mxu0 0.0
  %54 = vmatpush1.msra.mxu0 0.0
  %55 = vmatprep.subr.mxu0 0.0
  %56 = vmatpush1.msra.mxu0 0.0
  %57 = vmatprep.subr.mxu0 0.0
  %58 = vmatpush1.msra.mxu0 0.0
  %59 = vmatprep.subr.mxu0 0.0
  %60 = vmatpush1.msra.mxu0 0.0
  %61 = vmatprep.subr.mxu0 0.0
  %62 = vmatpush1.msra.mxu0 0.0
  %63 = vmatprep.subr.mxu0 0.0
  %64 = vmatpush1.msra.mxu0 0.0
  %65 = vmatprep.subr.mxu0 0.0
  %66 = vmatpush1.msra.mxu0 0.0
  %67 = vmatprep.subr.mxu0 0.0
  %68 = vmatpush1.msra.mxu0 0.0
  %69 = vmatprep.subr.mxu0 0.0
  %70 = vmatpush1.msra.mxu0 0.0
  %71 = vmatprep.subr.mxu0 0.0
  %72 = vmatpush1.msra.mxu0 0.0
  %73 = vmatprep.subr.mxu0 0.0
  %74 = vmatpush1.msra.mxu0 0.0
  %75 = vmatprep.subr.mxu0 0.0
  %76 = vmatpush1.msra.mxu0 0.0
  %77 = vmatprep.subr.mxu0 0.0
  %78 = vmatpush1.msra.mxu0 0.0
  %79 = vmatprep.subr.mxu0 0.0
  %80 = vmatpush1.msra.mxu0 0.0
  %81 = vmatprep.mubr.f32.mxu0 0.0
  %82 = vmatmul.mubr.f32.gmra.mrb[0].mxu0 %v15
  %v83 = vpop.f32.mrb[0].mxu0
  %v84 = vadd.f32 0.0, %v83
  %v85 = vpop.f32.mrb[0].mxu0
  %86 = vdwg.mxu0
  %v87 = vmax.f32 %v84, 0.0
  %s88 = scalar_lea.vmem %s0, 8
  %v89 = vld [vmem:[%s88] sm:$0xff]
  %v91 = vsel %vm13, %v89, 0
  %93 = vmatprep.subr.mxu0 0.0
  %94 = vmatpush1.msra.mxu0 %v87
  %95 = vmatprep.subr.mxu0 0.0
  %96 = vmatpush1.msra.mxu0 0.0
  %97 = vmatprep.subr.mxu0 0.0
  %98 = vmatpush1.msra.mxu0 0.0
  %99 = vmatprep.subr.mxu0 0.0
  %100 = vmatpush1.msra.mxu0 0.0
  %101 = vmatprep.subr.mxu0 0.0
  %102 = vmatpush1.msra.mxu0 0.0
  %103 = vmatprep.subr.mxu0 0.0
  %104 = vmatpush1.msra.mxu0 0.0
  %105 = vmatprep.subr.mxu0 0.0
  %106 = vmatpush1.msra.mxu0 0.0
  %107 = vmatprep.subr.mxu0 0.0
  %108 = vmatpush1.msra.mxu0 0.0
  %109 = vmatprep.subr.mxu0 0.0
  %110 = vmatpush1.msra.mxu0 0.0
  %111 = vmatprep.subr.mxu0 0.0
  %112 = vmatpush1.msra.mxu0 0.0
  %113 = vmatprep.subr.mxu0 0.0
  %114 = vmatpush1.msra.mxu0 0.0
  %115 = vmatprep.subr.mxu0 0.0
  %116 = vmatpush1.msra.mxu0 0.0
  %117 = vmatprep.subr.mxu0 0.0
  %118 = vmatpush1.msra.mxu0 0.0
  %119 = vmatprep.subr.mxu0 0.0
  %120 = vmatpush1.msra.mxu0 0.0
  %121 = vmatprep.subr.mxu0 0.0
  %122 = vmatpush1.msra.mxu0 0.0
  %123 = vmatprep.subr.mxu0 0.0
  %124 = vmatpush1.msra.mxu0 0.0
  %125 = vmatprep.subr.mxu0 0.0
  %126 = vmatpush1.msra.mxu0 0.0
  %127 = vmatprep.subr.mxu0 0.0
  %128 = vmatpush1.msra.mxu0 0.0
  %129 = vmatprep.subr.mxu0 0.0
  %130 = vmatpush1.msra.mxu0 0.0
  %131 = vmatprep.subr.mxu0 0.0
  %132 = vmatpush1.msra.mxu0 0.0
  %133 = vmatprep.subr.mxu0 0.0
  %134 = vmatpush1.msra.mxu0 0.0
  %135 = vmatprep.subr.mxu0 0.0
  %136 = vmatpush1.msra.mxu0 0.0
  %137 = vmatprep.subr.mxu0 0.0
  %138 = vmatpush1.msra.mxu0 0.0
  %139 = vmatprep.subr.mxu0 0.0
  %140 = vmatpush1.msra.mxu0 0.0
  %141 = vmatprep.subr.mxu0 0.0
  %142 = vmatpush1.msra.mxu0 0.0
  %143 = vmatprep.subr.mxu0 0.0
  %144 = vmatpush1.msra.mxu0 0.0
  %145 = vmatprep.subr.mxu0 0.0
  %146 = vmatpush1.msra.mxu0 0.0
  %147 = vmatprep.subr.mxu0 0.0
  %148 = vmatpush1.msra.mxu0 0.0
  %149 = vmatprep.subr.mxu0 0.0
  %150 = vmatpush1.msra.mxu0 0.0
  %151 = vmatprep.subr.mxu0 0.0
  %152 = vmatpush1.msra.mxu0 0.0
  %153 = vmatprep.subr.mxu0 0.0
  %154 = vmatpush1.msra.mxu0 0.0
  %155 = vmatprep.subr.mxu0 0.0
  %156 = vmatpush1.msra.mxu0 0.0
  %157 = vmatprep.mubr.f32.mxu0 0.0
  %158 = vmatmul.mubr.f32.gmra.mrb[0].mxu0 %v91
  %v159 = vpop.f32.mrb[0].mxu0
  %v160 = vadd.f32 0.0, %v159
  %v161 = vpop.f32.mrb[0].mxu0
  %162 = vdwg.mxu0
  %v163 = vmax.f32 %v160, 0.0
  %s164 = scalar_lea.vmem %s0, 16
  %v165 = vld [vmem:[%s164] sm:$0xff]
  %v167 = vsel %vm13, %v165, 0
  %169 = vmatprep.subr.mxu0 0.0
  %170 = vmatpush1.msra.mxu0 %v163
  %171 = vmatprep.subr.mxu0 0.0
  %172 = vmatpush1.msra.mxu0 0.0
  %173 = vmatprep.subr.mxu0 0.0
  %174 = vmatpush1.msra.mxu0 0.0
  %175 = vmatprep.subr.mxu0 0.0
  %176 = vmatpush1.msra.mxu0 0.0
  %177 = vmatprep.subr.mxu0 0.0
  %178 = vmatpush1.msra.mxu0 0.0
  %179 = vmatprep.subr.mxu0 0.0
  %180 = vmatpush1.msra.mxu0 0.0
  %181 = vmatprep.subr.mxu0 0.0
  %182 = vmatpush1.msra.mxu0 0.0
  %183 = vmatprep.subr.mxu0 0.0
  %184 = vmatpush1.msra.mxu0 0.0
  %185 = vmatprep.subr.mxu0 0.0
  %186 = vmatpush1.msra.mxu0 0.0
  %187 = vmatprep.subr.mxu0 0.0
  %188 = vmatpush1.msra.mxu0 0.0
  %189 = vmatprep.subr.mxu0 0.0
  %190 = vmatpush1.msra.mxu0 0.0
  %191 = vmatprep.subr.mxu0 0.0
  %192 = vmatpush1.msra.mxu0 0.0
  %193 = vmatprep.subr.mxu0 0.0
  %194 = vmatpush1.msra.mxu0 0.0
  %195 = vmatprep.subr.mxu0 0.0
  %196 = vmatpush1.msra.mxu0 0.0
  %197 = vmatprep.subr.mxu0 0.0
  %198 = vmatpush1.msra.mxu0 0.0
  %199 = vmatprep.subr.mxu0 0.0
  %200 = vmatpush1.msra.mxu0 0.0
  %201 = vmatprep.subr.mxu0 0.0
  %202 = vmatpush1.msra.mxu0 0.0
  %203 = vmatprep.subr.mxu0 0.0
  %204 = vmatpush1.msra.mxu0 0.0
  %205 = vmatprep.subr.mxu0 0.0
  %206 = vmatpush1.msra.mxu0 0.0
  %207 = vmatprep.subr.mxu0 0.0
  %208 = vmatpush1.msra.mxu0 0.0
  %209 = vmatprep.subr.mxu0 0.0
  %210 = vmatpush1.msra.mxu0 0.0
  %211 = vmatprep.subr.mxu0 0.0
  %212 = vmatpush1.msra.mxu0 0.0
  %213 = vmatprep.subr.mxu0 0.0
  %214 = vmatpush1.msra.mxu0 0.0
  %215 = vmatprep.subr.mxu0 0.0
  %216 = vmatpush1.msra.mxu0 0.0
  %217 = vmatprep.subr.mxu0 0.0
  %218 = vmatpush1.msra.mxu0 0.0
  %219 = vmatprep.subr.mxu0 0.0
  %220 = vmatpush1.msra.mxu0 0.0
  %221 = vmatprep.subr.mxu0 0.0
  %222 = vmatpush1.msra.mxu0 0.0
  %223 = vmatprep.subr.mxu0 0.0
  %224 = vmatpush1.msra.mxu0 0.0
  %225 = vmatprep.subr.mxu0 0.0
  %226 = vmatpush1.msra.mxu0 0.0
  %227 = vmatprep.subr.mxu0 0.0
  %228 = vmatpush1.msra.mxu0 0.0
  %229 = vmatprep.subr.mxu0 0.0
  %230 = vmatpush1.msra.mxu0 0.0
  %231 = vmatprep.subr.mxu0 0.0
  %232 = vmatpush1.msra.mxu0 0.0
  %233 = vmatprep.mubr.f32.mxu0 0.0
  %234 = vmatmul.mubr.f32.gmra.mrb[0].mxu0 %v167
  %v235 = vpop.f32.mrb[0].mxu0
  %v236 = vadd.f32 0.0, %v235
  %v237 = vpop.f32.mrb[0].mxu0
  %238 = vdwg.mxu0
  %v239 = vmax.f32 %v236, 0.0
  %s240 = scalar_lea.vmem %s0, 24
  %v241 = vld [vmem:[%s240] sm:$0xff]
  %v243 = vsel %vm13, %v241, 0
  %245 = vmatprep.subr.mxu0 0.0
  %246 = vmatpush1.msra.mxu0 %v239
  %247 = vmatprep.subr.mxu0 0.0
  %248 = vmatpush1.msra.mxu0 0.0
  %249 = vmatprep.subr.mxu0 0.0
  %250 = vmatpush1.msra.mxu0 0.0
  %251 = vmatprep.subr.mxu0 0.0
  %252 = vmatpush1.msra.mxu0 0.0
  %253 = vmatprep.subr.mxu0 0.0
  %254 = vmatpush1.msra.mxu0 0.0
  %255 = vmatprep.subr.mxu0 0.0
  %256 = vmatpush1.msra.mxu0 0.0
  %257 = vmatprep.subr.mxu0 0.0
  %258 = vmatpush1.msra.mxu0 0.0
  %259 = vmatprep.subr.mxu0 0.0
  %260 = vmatpush1.msra.mxu0 0.0
  %261 = vmatprep.subr.mxu0 0.0
  %262 = vmatpush1.msra.mxu0 0.0
  %263 = vmatprep.subr.mxu0 0.0
  %264 = vmatpush1.msra.mxu0 0.0
  %265 = vmatprep.subr.mxu0 0.0
  %266 = vmatpush1.msra.mxu0 0.0
  %267 = vmatprep.subr.mxu0 0.0
  %268 = vmatpush1.msra.mxu0 0.0
  %269 = vmatprep.subr.mxu0 0.0
  %270 = vmatpush1.msra.mxu0 0.0
  %271 = vmatprep.subr.mxu0 0.0
  %272 = vmatpush1.msra.mxu0 0.0
  %273 = vmatprep.subr.mxu0 0.0
  %274 = vmatpush1.msra.mxu0 0.0
  %275 = vmatprep.subr.mxu0 0.0
  %276 = vmatpush1.msra.mxu0 0.0
  %277 = vmatprep.subr.mxu0 0.0
  %278 = vmatpush1.msra.mxu0 0.0
  %279 = vmatprep.subr.mxu0 0.0
  %280 = vmatpush1.msra.mxu0 0.0
  %281 = vmatprep.subr.mxu0 0.0
  %282 = vmatpush1.msra.mxu0 0.0
  %283 = vmatprep.subr.mxu0 0.0
  %284 = vmatpush1.msra.mxu0 0.0
  %285 = vmatprep.subr.mxu0 0.0
  %286 = vmatpush1.msra.mxu0 0.0
  %287 = vmatprep.subr.mxu0 0.0
  %288 = vmatpush1.msra.mxu0 0.0
  %289 = vmatprep.subr.mxu0 0.0
  %290 = vmatpush1.msra.mxu0 0.0
  %291 = vmatprep.subr.mxu0 0.0
  %292 = vmatpush1.msra.mxu0 0.0
  %293 = vmatprep.subr.mxu0 0.0
  %294 = vmatpush1.msra.mxu0 0.0
  %295 = vmatprep.subr.mxu0 0.0
  %296 = vmatpush1.msra.mxu0 0.0
  %297 = vmatprep.subr.mxu0 0.0
  %298 = vmatpush1.msra.mxu0 0.0
  %299 = vmatprep.subr.mxu0 0.0
  %300 = vmatpush1.msra.mxu0 0.0
  %301 = vmatprep.subr.mxu0 0.0
  %302 = vmatpush1.msra.mxu0 0.0
  %303 = vmatprep.subr.mxu0 0.0
  %304 = vmatpush1.msra.mxu0 0.0
  %305 = vmatprep.subr.mxu0 0.0
  %306 = vmatpush1.msra.mxu0 0.0
  %307 = vmatprep.subr.mxu0 0.0
  %308 = vmatpush1.msra.mxu0 0.0
  %309 = vmatprep.mubr.f32.mxu0 0.0
  %310 = vmatmul.mubr.f32.gmra.mrb[0].mxu0 %v243
  %v311 = vpop.f32.mrb[0].mxu0
  %v312 = vadd.f32 0.0, %v311
  %v313 = vpop.f32.mrb[0].mxu0
  %314 = vdwg.mxu0
  %v316 = vrot.slane %v312, 1
  %v318 = vmax.f32 %v312, %v316
  %v319 = vsub.f32 %v312, %v318
  %v320 = vmul.f32 %v319, 1.442695
  %v321 = vpow.pop %v320
  %v323 = vrot.slane %v318, 7
  %v325 = vsub.f32 %v312, %v323
  %v326 = vmul.f32 %v325, 1.442695
  %v327 = vpow.pop %v326
  %v329 = vrot.slane %v327, 1
  %v331 = vadd.f32 %v321, %v329
  %v332 = vrcp.pop %v331
  %v333 = vmul.f32 %v331, %v332
  %v334 = vsub.f32 2.0, %v333
  %v335 = vmul.f32 %v332, %v334
  %v336 = vmul.f32 %v321, %v335
  %337 = vst [vmem:[%s2] sm:$0x1] %v336
  %v339 = vrot.slane %v335, 7
  %v341 = vmul.f32 %v327, %v339
  %342 = vst [vmem:[%s2] sm:$0x2] %v341
  // Predicated region
  $region10: #{mlp_forward.1} parent=0 // pred_check
    _
  $region11: #{mlp_forward.1} parent=0 // pred_check_branch
    %344 = sbr.rel (0) target = $region13
  $region12: #{mlp_forward.1} parent=0 // pred_region
    _
  $region13: #{mlp_forward.1} parent=0 // pred_fallthru
    _
  // Predicated region
  $region14: #{mlp_forward.1} parent=0 // pred_check
    _
  $region15: #{mlp_forward.1} parent=0 // pred_check_branch
    %346 = sbr.rel (0) target = $region17
  $region16: #{mlp_forward.1} parent=0 // pred_region
    _
  $region17: #{mlp_forward.1} parent=0 // pred_fallthru
    _

</llo_original>
